<compile_context>
chip_gen: v5e
topology: v5e:2x2
jax: 0.10.0
libtpu: 0.0.40
codegen_flags: <defaults>
</compile_context>

<pallas_src>
import functools

import jax
import jax.numpy as jnp
from jax import lax
from jax.experimental import pallas as pl
from jax.experimental.pallas import tpu as pltpu


def _sbb_kernel(H, W, x_ref, w1_ref, b1_ref, w2_ref, b2_ref, w3_ref, b3_ref,
                w4_ref, b4_ref, o_ref):
    """Channel-major block: x_ref is (Cin, L) with L = Nb*H*W (batch in lanes)."""
    f32 = jnp.float32
    HW = H * W
    L = x_ref.shape[1]

    # One-time (1, L) 0/1 mask rows (batch-safe: pos = offset inside one
    # H*W slab, wpos = column inside a row; HW % W == 0 so % W is exact).
    idx = lax.broadcasted_iota(jnp.int32, (1, L), 1)
    pos = idx % HW
    wpos = idx % W
    up_mask = (pos >= W).astype(f32)                 # zero padded row h-1 (+ batch seam)
    dn_mask = (pos < (H - 1) * W).astype(f32)        # zero padded row h+1 (+ batch seam)
    lf_mask = (wpos >= 1).astype(f32)                # zero padded col w-1 (+ row/batch seam)
    rt_mask = (wpos <= W - 2).astype(f32)            # zero padded col w+1 (+ row/batch seam)

    x = x_ref[...]                                   # (Cin, L), f32

    # --- conv1: 1x1 + ReLU -> (Cmid, L) ---
    h1 = jnp.dot(w1_ref[...], x, preferred_element_type=f32) + b1_ref[...]
    h1 = jnp.maximum(h1, 0.0)

    # --- conv2: (3,1) kernel, pad=(1,0) -> ONE fused matmul, K = 3*Cmid ---
    up = pltpu.roll(h1, W, axis=1) * up_mask         # in[h-1]
    dn = pltpu.roll(h1, L - W, axis=1) * dn_mask     # in[h+1]
    stack2 = jnp.concatenate([up, h1, dn], axis=0)   # (3*Cmid, L)
    h2 = jnp.dot(w2_ref[...], stack2, preferred_element_type=f32) + b2_ref[...]
    h2 = jnp.maximum(h2, 0.0)

    # --- conv3: (1,3) kernel, pad=(0,1) -> ONE fused matmul, K = 3*Cmid ---
    lf = pltpu.roll(h2, 1, axis=1) * lf_mask         # in[w-1]
    rt = pltpu.roll(h2, L - 1, axis=1) * rt_mask     # in[w+1]
    stack3 = jnp.concatenate([lf, h2, rt], axis=0)   # (3*Cmid, L)
    h3 = jnp.dot(w3_ref[...], stack3, preferred_element_type=f32) + b3_ref[...]
    h3 = jnp.maximum(h3, 0.0)

    # --- conv4: 1x1 (no activation) -> (Cout, L), lane-dense store ---
    out = jnp.dot(w4_ref[...], h3, preferred_element_type=f32) + b4_ref[...]
    o_ref[...] = out.astype(o_ref.dtype)


def small_basic_block_pallas(x_nchw, params):
    """x_nchw: (N, Cin, H, W) float32. Returns (N, Cout, H, W)."""
    N, Cin, H, W = x_nchw.shape
    Cmid = params["w1"].shape[0]
    Cout = params["w4"].shape[0]
    HW = H * W
    f32 = jnp.float32

    # Fold the batch into the lane axis: (N, Cin, HW) -> (Cin, N*HW).
    x_cm = jnp.transpose(x_nchw.reshape(N, Cin, HW), (1, 0, 2)).reshape(Cin, N * HW)

    # 2 fat grid steps when shapes allow (both TCs on v7x, lane dim stays a
    # 128-multiple); otherwise a single fully-folded step.
    if N % 2 == 0 and ((N // 2) * HW) % 128 == 0:
        G = 2
    else:
        G = 1
    Lb = (N // G) * HW

    # Weights -> (out, in) matmul layouts, f32.  Fused 3-tap weight columns
    # ordered [tap0 | tap1 | tap2] to match the [shift(-1), center, shift(+1)]
    # input stacking in the kernel.
    w1 = params["w1"].reshape(Cmid, Cin).astype(f32)
    b1 = params["b1"].reshape(Cmid, 1).astype(f32)
    w2 = jnp.transpose(params["w2"][:, :, :, 0], (0, 2, 1)) \
            .reshape(Cmid, 3 * Cmid).astype(f32)
    b2 = params["b2"].reshape(Cmid, 1).astype(f32)
    w3 = jnp.transpose(params["w3"][:, :, 0, :], (0, 2, 1)) \
            .reshape(Cmid, 3 * Cmid).astype(f32)
    b3 = params["b3"].reshape(Cmid, 1).astype(f32)
    w4 = params["w4"].reshape(Cout, Cmid).astype(f32)
    b4 = params["b4"].reshape(Cout, 1).astype(f32)

    const = lambda g: (0, 0)   # weights resident across grid steps

    out_cm = pl.pallas_call(
        functools.partial(_sbb_kernel, H, W),
        out_shape=jax.ShapeDtypeStruct((Cout, N * HW), x_nchw.dtype),
        grid_spec=pltpu.PrefetchScalarGridSpec(
            num_scalar_prefetch=0,
            grid=(G,),
            in_specs=[
                pl.BlockSpec((Cin, Lb), lambda g: (0, g)),
                pl.BlockSpec((Cmid, Cin), const),
                pl.BlockSpec((Cmid, 1), const),
                pl.BlockSpec((Cmid, 3 * Cmid), const),
                pl.BlockSpec((Cmid, 1), const),
                pl.BlockSpec((Cmid, 3 * Cmid), const),
                pl.BlockSpec((Cmid, 1), const),
                pl.BlockSpec((Cout, Cmid), const),
                pl.BlockSpec((Cout, 1), const),
            ],
            out_specs=pl.BlockSpec((Cout, Lb), lambda g: (0, g)),
        ),
        compiler_params=pltpu.CompilerParams(
            dimension_semantics=("parallel",)),
    )(x_cm, w1, b1, w2, b2, w3, b3, w4, b4)

    # (Cout, N*HW) -> NCHW
    return jnp.transpose(out_cm.reshape(Cout, N, HW), (1, 0, 2)).reshape(N, Cout, H, W)


# ----------------------- pure-JAX reference (NCHW, f32) -----------------------
def _conv_nchw(x, w, b, padding):
    y = lax.conv_general_dilated(
        x, w, window_strides=(1, 1), padding=padding,
        dimension_numbers=("NCHW", "OIHW", "NCHW"))
    return y + b.reshape(1, -1, 1, 1)


def small_basic_block_ref(x, p):
    y = jax.nn.relu(_conv_nchw(x, p["w1"], p["b1"], [(0, 0), (0, 0)]))
    y = jax.nn.relu(_conv_nchw(y, p["w2"], p["b2"], [(1, 1), (0, 0)]))
    y = jax.nn.relu(_conv_nchw(y, p["w3"], p["b3"], [(0, 0), (1, 1)]))
    y = _conv_nchw(y, p["w4"], p["b4"], [(0, 0), (0, 0)])
    return y


if __name__ == "__main__":
    key = jax.random.PRNGKey(0)
    N, Cin, H, W = 2, 4, 16, 16
    Cout = 32
    Cmid = Cout // 4

    ks = jax.random.split(key, 9)
    params = {
        "w1": jax.random.normal(ks[0], (Cmid, Cin, 1, 1), jnp.float32) * 0.1,
        "b1": jax.random.normal(ks[1], (Cmid,), jnp.float32) * 0.1,
        "w2": jax.random.normal(ks[2], (Cmid, Cmid, 3, 1), jnp.float32) * 0.1,
        "b2": jax.random.normal(ks[3], (Cmid,), jnp.float32) * 0.1,
        "w3": jax.random.normal(ks[4], (Cmid, Cmid, 1, 3), jnp.float32) * 0.1,
        "b3": jax.random.normal(ks[5], (Cmid,), jnp.float32) * 0.1,
        "w4": jax.random.normal(ks[6], (Cout, Cmid, 1, 1), jnp.float32) * 0.1,
        "b4": jax.random.normal(ks[7], (Cout,), jnp.float32) * 0.1,
    }
    x = jax.random.normal(ks[8], (N, Cin, H, W), jnp.float32)

    out = jax.block_until_ready(small_basic_block_pallas(x, params))
    ref = small_basic_block_ref(x, params)

    assert out.shape == ref.shape == (N, Cout, H, W)
    # All-f32 matmuls now (bf16 casts dropped) => tight tolerance.
    if not jnp.allclose(out, ref, atol=5e-3, rtol=5e-3):
        raise AssertionError(
            f"mismatch, max abs err = {jnp.max(jnp.abs(out - ref))}")
    print("KERNEL_OK")
</pallas_src>

<mosaic_0001>
module attributes {stable_mosaic.version = 11 : i64} {
  func.func @_sbb_kernel(%arg0: i32, %arg1: memref<4x256xf32, #tpu.memory_space<vmem>>, %arg2: memref<8x4xf32, #tpu.memory_space<vmem>>, %arg3: memref<8x1xf32, #tpu.memory_space<vmem>>, %arg4: memref<8x24xf32, #tpu.memory_space<vmem>>, %arg5: memref<8x1xf32, #tpu.memory_space<vmem>>, %arg6: memref<8x24xf32, #tpu.memory_space<vmem>>, %arg7: memref<8x1xf32, #tpu.memory_space<vmem>>, %arg8: memref<32x8xf32, #tpu.memory_space<vmem>>, %arg9: memref<32x1xf32, #tpu.memory_space<vmem>>, %arg10: memref<32x256xf32, #tpu.memory_space<vmem>>) attributes {dimension_semantics = [#tpu.dimension_semantics<parallel>], iteration_bounds = array<i64: 2>, scalar_prefetch = 0 : i64, scratch_operands = 0 : i64, tpu.core_type = #tpu.core_type<tc>, window_params = [{transform_indices = @transform_0, window_bounds = array<i64: 4, 256>}, {pipeline_mode = #tpu.pipeline_mode<synchronous>, transform_indices = @transform_1, window_bounds = array<i64: 8, 4>}, {pipeline_mode = #tpu.pipeline_mode<synchronous>, transform_indices = @transform_2, window_bounds = array<i64: 8, 1>}, {pipeline_mode = #tpu.pipeline_mode<synchronous>, transform_indices = @transform_3, window_bounds = array<i64: 8, 24>}, {pipeline_mode = #tpu.pipeline_mode<synchronous>, transform_indices = @transform_4, window_bounds = array<i64: 8, 1>}, {pipeline_mode = #tpu.pipeline_mode<synchronous>, transform_indices = @transform_5, window_bounds = array<i64: 8, 24>}, {pipeline_mode = #tpu.pipeline_mode<synchronous>, transform_indices = @transform_6, window_bounds = array<i64: 8, 1>}, {pipeline_mode = #tpu.pipeline_mode<synchronous>, transform_indices = @transform_7, window_bounds = array<i64: 32, 8>}, {pipeline_mode = #tpu.pipeline_mode<synchronous>, transform_indices = @transform_8, window_bounds = array<i64: 32, 1>}, {transform_indices = @transform_9, window_bounds = array<i64: 32, 256>}]} {
    %0 = tpu.iota {dimensions = array<i32: 1>} : vector<1x256xi32>
    %c256_i32 = arith.constant 256 : i32
    %c0_i32 = arith.constant 0 : i32
    %1 = arith.cmpi eq, %c256_i32, %c0_i32 : i32
    %c1_i32 = arith.constant 1 : i32
    %2 = arith.select %1, %c1_i32, %c256_i32 : i32
    %3 = vector.broadcast %2 : i32 to vector<1x256xi32>
    %4 = arith.remsi %0, %3 : vector<1x256xi32>
    %c0_i32_0 = arith.constant 0 : i32
    %5 = vector.broadcast %c0_i32_0 : i32 to vector<1x256xi32>
    %6 = arith.cmpi ne, %4, %5 : vector<1x256xi32>
    %c0_i32_1 = arith.constant 0 : i32
    %7 = vector.broadcast %c0_i32_1 : i32 to vector<1x256xi32>
    %8 = arith.cmpi slt, %4, %7 : vector<1x256xi32>
    %c0_i32_2 = arith.constant 0 : i32
    %9 = arith.cmpi slt, %2, %c0_i32_2 : i32
    %10 = vector.broadcast %9 : i1 to vector<1x256xi1>
    %11 = vector.broadcast %10 : vector<1x256xi1> to vector<1x256xi1>
    %12 = arith.xori %8, %11 : vector<1x256xi1>
    %13 = arith.andi %12, %6 : vector<1x256xi1>
    %14 = vector.broadcast %2 : i32 to vector<1x256xi32>
    %15 = arith.addi %4, %14 : vector<1x256xi32>
    %16 = arith.select %13, %15, %4 : vector<1x256xi1>, vector<1x256xi32>
    %c16_i32 = arith.constant 16 : i32
    %c0_i32_3 = arith.constant 0 : i32
    %17 = arith.cmpi eq, %c16_i32, %c0_i32_3 : i32
    %c1_i32_4 = arith.constant 1 : i32
    %18 = arith.select %17, %c1_i32_4, %c16_i32 : i32
    %19 = vector.broadcast %18 : i32 to vector<1x256xi32>
    %20 = arith.remsi %0, %19 : vector<1x256xi32>
    %c0_i32_5 = arith.constant 0 : i32
    %21 = vector.broadcast %c0_i32_5 : i32 to vector<1x256xi32>
    %22 = arith.cmpi ne, %20, %21 : vector<1x256xi32>
    %c0_i32_6 = arith.constant 0 : i32
    %23 = vector.broadcast %c0_i32_6 : i32 to vector<1x256xi32>
    %24 = arith.cmpi slt, %20, %23 : vector<1x256xi32>
    %c0_i32_7 = arith.constant 0 : i32
    %25 = arith.cmpi slt, %18, %c0_i32_7 : i32
    %26 = vector.broadcast %25 : i1 to vector<1x256xi1>
    %27 = vector.broadcast %26 : vector<1x256xi1> to vector<1x256xi1>
    %28 = arith.xori %24, %27 : vector<1x256xi1>
    %29 = arith.andi %28, %22 : vector<1x256xi1>
    %30 = vector.broadcast %18 : i32 to vector<1x256xi32>
    %31 = arith.addi %20, %30 : vector<1x256xi32>
    %32 = arith.select %29, %31, %20 : vector<1x256xi1>, vector<1x256xi32>
    %c16_i32_8 = arith.constant 16 : i32
    %33 = vector.broadcast %c16_i32_8 : i32 to vector<1x256xi32>
    %34 = arith.cmpi sge, %16, %33 : vector<1x256xi32>
    %35 = arith.extui %34 : vector<1x256xi1> to vector<1x256xi32>
    %36 = arith.sitofp %35 : vector<1x256xi32> to vector<1x256xf32>
    %c240_i32 = arith.constant 240 : i32
    %37 = vector.broadcast %c240_i32 : i32 to vector<1x256xi32>
    %38 = arith.cmpi slt, %16, %37 : vector<1x256xi32>
    %39 = arith.extui %38 : vector<1x256xi1> to vector<1x256xi32>
    %40 = arith.sitofp %39 : vector<1x256xi32> to vector<1x256xf32>
    %c1_i32_9 = arith.constant 1 : i32
    %41 = vector.broadcast %c1_i32_9 : i32 to vector<1x256xi32>
    %42 = arith.cmpi sge, %32, %41 : vector<1x256xi32>
    %43 = arith.extui %42 : vector<1x256xi1> to vector<1x256xi32>
    %44 = arith.sitofp %43 : vector<1x256xi32> to vector<1x256xf32>
    %c14_i32 = arith.constant 14 : i32
    %45 = vector.broadcast %c14_i32 : i32 to vector<1x256xi32>
    %46 = arith.cmpi sle, %32, %45 : vector<1x256xi32>
    %47 = arith.extui %46 : vector<1x256xi1> to vector<1x256xi32>
    %48 = arith.sitofp %47 : vector<1x256xi32> to vector<1x256xf32>
    %c0 = arith.constant 0 : index
    %c0_10 = arith.constant 0 : index
    %49 = vector.load %arg1[%c0, %c0_10] : memref<4x256xf32, #tpu.memory_space<vmem>>, vector<4x256xf32>
    %c0_11 = arith.constant 0 : index
    %c0_12 = arith.constant 0 : index
    %50 = vector.load %arg2[%c0_11, %c0_12] : memref<8x4xf32, #tpu.memory_space<vmem>>, vector<8x4xf32>
    %cst = arith.constant dense<0.000000e+00> : vector<8x256xf32>
    %51 = tpu.matmul %50, %49, %cst {dimension_numbers = #tpu.dot_dimension_numbers<[1], [0], [0], [1], [0, 0, 1, 1], [], []>} : vector<8x4xf32>, vector<4x256xf32>, vector<8x256xf32> -> vector<8x256xf32>
    %c0_13 = arith.constant 0 : index
    %c0_14 = arith.constant 0 : index
    %52 = vector.load %arg3[%c0_13, %c0_14] : memref<8x1xf32, #tpu.memory_space<vmem>>, vector<8x1xf32>
    %53 = vector.broadcast %52 : vector<8x1xf32> to vector<8x256xf32>
    %54 = arith.addf %51, %53 : vector<8x256xf32>
    %cst_15 = arith.constant 0.000000e+00 : f32
    %55 = vector.broadcast %cst_15 : f32 to vector<8x256xf32>
    %56 = arith.maximumf %54, %55 : vector<8x256xf32>
    %c16_i32_16 = arith.constant 16 : i32
    %57 = tpu.dynamic_rotate %56 by %c16_i32_16 dim 1 : vector<8x256xf32>, i32 -> vector<8x256xf32>
    %58 = vector.broadcast %36 : vector<1x256xf32> to vector<8x256xf32>
    %59 = arith.mulf %57, %58 : vector<8x256xf32>
    %c240_i32_17 = arith.constant 240 : i32
    %60 = tpu.dynamic_rotate %56 by %c240_i32_17 dim 1 : vector<8x256xf32>, i32 -> vector<8x256xf32>
    %61 = vector.broadcast %40 : vector<1x256xf32> to vector<8x256xf32>
    %62 = arith.mulf %60, %61 : vector<8x256xf32>
    %63 = tpu.concatenate %59, %56, %62 in 0 : vector<8x256xf32>, vector<8x256xf32>, vector<8x256xf32> -> vector<24x256xf32>
    %c0_18 = arith.constant 0 : index
    %c0_19 = arith.constant 0 : index
    %64 = vector.load %arg4[%c0_18, %c0_19] : memref<8x24xf32, #tpu.memory_space<vmem>>, vector<8x24xf32>
    %cst_20 = arith.constant dense<0.000000e+00> : vector<8x256xf32>
    %65 = tpu.matmul %64, %63, %cst_20 {dimension_numbers = #tpu.dot_dimension_numbers<[1], [0], [0], [1], [0, 0, 1, 1], [], []>} : vector<8x24xf32>, vector<24x256xf32>, vector<8x256xf32> -> vector<8x256xf32>
    %c0_21 = arith.constant 0 : index
    %c0_22 = arith.constant 0 : index
    %66 = vector.load %arg5[%c0_21, %c0_22] : memref<8x1xf32, #tpu.memory_space<vmem>>, vector<8x1xf32>
    %67 = vector.broadcast %66 : vector<8x1xf32> to vector<8x256xf32>
    %68 = arith.addf %65, %67 : vector<8x256xf32>
    %cst_23 = arith.constant 0.000000e+00 : f32
    %69 = vector.broadcast %cst_23 : f32 to vector<8x256xf32>
    %70 = arith.maximumf %68, %69 : vector<8x256xf32>
    %c1_i32_24 = arith.constant 1 : i32
    %71 = tpu.dynamic_rotate %70 by %c1_i32_24 dim 1 : vector<8x256xf32>, i32 -> vector<8x256xf32>
    %72 = vector.broadcast %44 : vector<1x256xf32> to vector<8x256xf32>
    %73 = arith.mulf %71, %72 : vector<8x256xf32>
    %c255_i32 = arith.constant 255 : i32
    %74 = tpu.dynamic_rotate %70 by %c255_i32 dim 1 : vector<8x256xf32>, i32 -> vector<8x256xf32>
    %75 = vector.broadcast %48 : vector<1x256xf32> to vector<8x256xf32>
    %76 = arith.mulf %74, %75 : vector<8x256xf32>
    %77 = tpu.concatenate %73, %70, %76 in 0 : vector<8x256xf32>, vector<8x256xf32>, vector<8x256xf32> -> vector<24x256xf32>
    %c0_25 = arith.constant 0 : index
    %c0_26 = arith.constant 0 : index
    %78 = vector.load %arg6[%c0_25, %c0_26] : memref<8x24xf32, #tpu.memory_space<vmem>>, vector<8x24xf32>
    %cst_27 = arith.constant dense<0.000000e+00> : vector<8x256xf32>
    %79 = tpu.matmul %78, %77, %cst_27 {dimension_numbers = #tpu.dot_dimension_numbers<[1], [0], [0], [1], [0, 0, 1, 1], [], []>} : vector<8x24xf32>, vector<24x256xf32>, vector<8x256xf32> -> vector<8x256xf32>
    %c0_28 = arith.constant 0 : index
    %c0_29 = arith.constant 0 : index
    %80 = vector.load %arg7[%c0_28, %c0_29] : memref<8x1xf32, #tpu.memory_space<vmem>>, vector<8x1xf32>
    %81 = vector.broadcast %80 : vector<8x1xf32> to vector<8x256xf32>
    %82 = arith.addf %79, %81 : vector<8x256xf32>
    %cst_30 = arith.constant 0.000000e+00 : f32
    %83 = vector.broadcast %cst_30 : f32 to vector<8x256xf32>
    %84 = arith.maximumf %82, %83 : vector<8x256xf32>
    %c0_31 = arith.constant 0 : index
    %c0_32 = arith.constant 0 : index
    %85 = vector.load %arg8[%c0_31, %c0_32] : memref<32x8xf32, #tpu.memory_space<vmem>>, vector<32x8xf32>
    %cst_33 = arith.constant dense<0.000000e+00> : vector<32x256xf32>
    %86 = tpu.matmul %85, %84, %cst_33 {dimension_numbers = #tpu.dot_dimension_numbers<[1], [0], [0], [1], [0, 0, 1, 1], [], []>} : vector<32x8xf32>, vector<8x256xf32>, vector<32x256xf32> -> vector<32x256xf32>
    %c0_34 = arith.constant 0 : index
    %c0_35 = arith.constant 0 : index
    %87 = vector.load %arg9[%c0_34, %c0_35] : memref<32x1xf32, #tpu.memory_space<vmem>>, vector<32x1xf32>
    %88 = vector.broadcast %87 : vector<32x1xf32> to vector<32x256xf32>
    %89 = arith.addf %86, %88 : vector<32x256xf32>
    %c0_36 = arith.constant 0 : index
    %c0_37 = arith.constant 0 : index
    %90 = vector.load %arg10[%c0_36, %c0_37] : memref<32x256xf32, #tpu.memory_space<vmem>>, vector<32x256xf32>
    tpu.vector_store %arg10[%c0_36, %c0_37], %89 {strides = array<i32>} : memref<32x256xf32, #tpu.memory_space<vmem>>, vector<32x256xf32>,
    return
  }
  func.func @transform_0(%arg0: i32) -> (i32, i32) {
    %c0_i32 = arith.constant 0 : i32
    %c0_i32_0 = arith.constant 0 : i32
    return %c0_i32, %arg0 : i32, i32
  }
  func.func @transform_1(%arg0: i32) -> (i32, i32) {
    %c0_i32 = arith.constant 0 : i32
    %c0_i32_0 = arith.constant 0 : i32
    %c0_i32_1 = arith.constant 0 : i32
    return %c0_i32, %c0_i32_0 : i32, i32
  }
  func.func @transform_2(%arg0: i32) -> (i32, i32) {
    %c0_i32 = arith.constant 0 : i32
    %c0_i32_0 = arith.constant 0 : i32
    %c0_i32_1 = arith.constant 0 : i32
    return %c0_i32, %c0_i32_0 : i32, i32
  }
  func.func @transform_3(%arg0: i32) -> (i32, i32) {
    %c0_i32 = arith.constant 0 : i32
    %c0_i32_0 = arith.constant 0 : i32
    %c0_i32_1 = arith.constant 0 : i32
    return %c0_i32, %c0_i32_0 : i32, i32
  }
  func.func @transform_4(%arg0: i32) -> (i32, i32) {
    %c0_i32 = arith.constant 0 : i32
    %c0_i32_0 = arith.constant 0 : i32
    %c0_i32_1 = arith.constant 0 : i32
    return %c0_i32, %c0_i32_0 : i32, i32
  }
  func.func @transform_5(%arg0: i32) -> (i32, i32) {
    %c0_i32 = arith.constant 0 : i32
    %c0_i32_0 = arith.constant 0 : i32
    %c0_i32_1 = arith.constant 0 : i32
    return %c0_i32, %c0_i32_0 : i32, i32
  }
  func.func @transform_6(%arg0: i32) -> (i32, i32) {
    %c0_i32 = arith.constant 0 : i32
    %c0_i32_0 = arith.constant 0 : i32
    %c0_i32_1 = arith.constant 0 : i32
    return %c0_i32, %c0_i32_0 : i32, i32
  }
  func.func @transform_7(%arg0: i32) -> (i32, i32) {
    %c0_i32 = arith.constant 0 : i32
    %c0_i32_0 = arith.constant 0 : i32
    %c0_i32_1 = arith.constant 0 : i32
    return %c0_i32, %c0_i32_0 : i32, i32
  }
  func.func @transform_8(%arg0: i32) -> (i32, i32) {
    %c0_i32 = arith.constant 0 : i32
    %c0_i32_0 = arith.constant 0 : i32
    %c0_i32_1 = arith.constant 0 : i32
    return %c0_i32, %c0_i32_0 : i32, i32
  }
  func.func @transform_9(%arg0: i32) -> (i32, i32) {
    %c0_i32 = arith.constant 0 : i32
    %c0_i32_0 = arith.constant 0 : i32
    return %c0_i32, %arg0 : i32, i32
  }
}

</mosaic_0001>

<llo_original>
// kernel: tpu_custom_call.1
$region0: #{tpu_custom_call.1}
  #allocation0 [shape = 'u32[]', space=smem, size = 0x4, offset = 0x4, fixed_abs, tag = 'smem constant byte address 0x4 - core index']
  #allocation1 [shape = 'u32[72,128]{1,0:T(1,128)}', space=vmem, size = 0x9000, scoped, tag = 'internal scratch']
  %s0 = inlined_call_operand.vmem [shape: f32[4,512], index: 0, kind: input, shape index: {}]
  %s1 = inlined_call_operand.vmem [shape: f32[8,4], index: 1, kind: input, shape index: {}]
  %s2 = inlined_call_operand.vmem [shape: f32[8,1], index: 2, kind: input, shape index: {}]
  %s3 = inlined_call_operand.vmem [shape: f32[8,24], index: 3, kind: input, shape index: {}]
  %s4 = inlined_call_operand.vmem [shape: f32[8,1], index: 4, kind: input, shape index: {}]
  %s5 = inlined_call_operand.vmem [shape: f32[8,24], index: 5, kind: input, shape index: {}]
  %s6 = inlined_call_operand.vmem [shape: f32[8,1], index: 6, kind: input, shape index: {}]
  %s7 = inlined_call_operand.vmem [shape: f32[32,8], index: 7, kind: input, shape index: {}]
  %s8 = inlined_call_operand.vmem [shape: f32[32,1], index: 8, kind: input, shape index: {}]
  %s9 = inlined_call_operand.hbm [shape: f32[32,512], index: 9, kind: output, shape index: {}]
  %s10 = sld [smem:[#allocation0]]
  $region69: #{tpu_custom_call.1} parent=0
    _
  %s12 = ssub.s32 1, %s10
  %s13 = scalar_select 0, %s12, %s10
  $region1: #{tpu_custom_call.1} parent=0
    #allocation2 [shape = 'u8[65536]{0}', space=vmem, size = 0x10000, scoped, tag = 'output window, operand 0']
    #allocation3 [shape = 's32[2]{0}', space=sflag, size = 0x8, scoped, tag = 'scoped memory for tpu_custom_call.1']
    %14 = vsyncpa [#allocation3], 0
    %s15 = scalar_lea.sflag [#allocation3], 1
    %16 = vsyncpa %s15, 0
    loop: start=0, step=1, limit=4
    $region2: #{tpu_custom_call.1} parent=1 // loop_pre_header
      _
    $region3: #{tpu_custom_call.1} parent=1 // loop_header
      %s18 = sphi 0, %s22
      %p19 = scmp.ge.s32.totalorder %s18, 4
      %s28 = sphi 0, %s30
      %s31 = sphi 0, %s28
      %s32 = sphi 0, %s31
      %s48 = sphi 0, %s32
      %s52 = sphi 0, %s52
      %s54 = sphi 0, %s52
      %s55 = sphi 0, %s54
      %s69 = sphi 0, %s55
      %s73 = sphi 0, %s73
      %s75 = sphi 0, %s73
      %s76 = sphi 0, %s75
      %s90 = sphi 0, %s76
      %s94 = sphi 0, %s94
      %s96 = sphi 0, %s94
      %s97 = sphi 0, %s96
      %s111 = sphi 0, %s97
      %s115 = sphi 0, %s115
      %s117 = sphi 0, %s115
      %s118 = sphi 0, %s117
      %s132 = sphi 0, %s118
      %s136 = sphi 0, %s136
      %s138 = sphi 0, %s136
      %s139 = sphi 0, %s138
      %s153 = sphi 0, %s139
      %s157 = sphi 0, %s157
      %s159 = sphi 0, %s157
      %s160 = sphi 0, %s159
      %s174 = sphi 0, %s160
      %s178 = sphi 0, %s178
      %s180 = sphi 0, %s178
      %s181 = sphi 0, %s180
      %s195 = sphi 0, %s181
      %s199 = sphi 0, %s199
      %s201 = sphi 0, %s199
      %s202 = sphi 0, %s201
      %s216 = sphi 0, %s202
      %s222 = sphi 0, %s224
      %s225 = sphi 0, %s222
      %s226 = sphi 0, %s225
      %s242 = sphi 0, %s226
    $region4: #{tpu_custom_call.1} parent=1 // loop_header_branch
      %21 = sbr.rel (%p19) target = $region8
    $region5: #{tpu_custom_call.1} parent=1 // loop_body
      %s23 = ssub.s32 %s18, 1
      %s24 = ssub.s32 %s18, 2
      %s25 = sadd.s32 %s18, 1
      %s26 = ssub.s32 %s18, %s25
      %p27 = scmp.eq.s32.totalorder %s26, 0
      %s29 = sadd.s32 %s28, 1
      %s30 = scalar_select %p27, %s28, %s29
      %p33 = pneg %p27
      %p34 = scmp.eq.s32.totalorder %s18, 1
      %p35 = por %p33, %p34
      %p36 = scmp.ne.s32.totalorder %s28, %s31
      %p37 = scmp.eq.s32.totalorder %s18, 0
      %p38 = por %p36, %p37
      %p39 = scmp.ne.s32.totalorder %s28, %s31
      %p40 = scmp.eq.s32.totalorder %s23, 1
      %p41 = por %p39, %p40
      %p42 = scmp.ne.s32.totalorder %s31, %s32
      %p43 = scmp.eq.s32.totalorder %s23, 0
      %p44 = por %p42, %p43
      %p45 = scmp.ne.s32.totalorder %s31, %s32
      %p46 = scmp.eq.s32.totalorder %s24, 1
      %p47 = por %p45, %p46
      %p49 = scmp.ne.s32.totalorder %s32, %s48
      %p50 = scmp.eq.s32.totalorder %s24, 0
      %p51 = por %p49, %p50
      %s53 = sadd.s32 %s52, 1
      %p56 = scmp.eq.s32.totalorder %s18, 1
      %p57 = scmp.ne.s32.totalorder %s52, %s54
      %p58 = scmp.eq.s32.totalorder %s18, 0
      %p59 = por %p57, %p58
      %p60 = scmp.ne.s32.totalorder %s52, %s54
      %p61 = scmp.eq.s32.totalorder %s23, 1
      %p62 = por %p60, %p61
      %p63 = scmp.ne.s32.totalorder %s54, %s55
      %p64 = scmp.eq.s32.totalorder %s23, 0
      %p65 = por %p63, %p64
      %p66 = scmp.ne.s32.totalorder %s54, %s55
      %p67 = scmp.eq.s32.totalorder %s24, 1
      %p68 = por %p66, %p67
      %p70 = scmp.ne.s32.totalorder %s55, %s69
      %p71 = scmp.eq.s32.totalorder %s24, 0
      %p72 = por %p70, %p71
      %s74 = sadd.s32 %s73, 1
      %p77 = scmp.eq.s32.totalorder %s18, 1
      %p78 = scmp.ne.s32.totalorder %s73, %s75
      %p79 = scmp.eq.s32.totalorder %s18, 0
      %p80 = por %p78, %p79
      %p81 = scmp.ne.s32.totalorder %s73, %s75
      %p82 = scmp.eq.s32.totalorder %s23, 1
      %p83 = por %p81, %p82
      %p84 = scmp.ne.s32.totalorder %s75, %s76
      %p85 = scmp.eq.s32.totalorder %s23, 0
      %p86 = por %p84, %p85
      %p87 = scmp.ne.s32.totalorder %s75, %s76
      %p88 = scmp.eq.s32.totalorder %s24, 1
      %p89 = por %p87, %p88
      %p91 = scmp.ne.s32.totalorder %s76, %s90
      %p92 = scmp.eq.s32.totalorder %s24, 0
      %p93 = por %p91, %p92
      %s95 = sadd.s32 %s94, 1
      %p98 = scmp.eq.s32.totalorder %s18, 1
      %p99 = scmp.ne.s32.totalorder %s94, %s96
      %p100 = scmp.eq.s32.totalorder %s18, 0
      %p101 = por %p99, %p100
      %p102 = scmp.ne.s32.totalorder %s94, %s96
      %p103 = scmp.eq.s32.totalorder %s23, 1
      %p104 = por %p102, %p103
      %p105 = scmp.ne.s32.totalorder %s96, %s97
      %p106 = scmp.eq.s32.totalorder %s23, 0
      %p107 = por %p105, %p106
      %p108 = scmp.ne.s32.totalorder %s96, %s97
      %p109 = scmp.eq.s32.totalorder %s24, 1
      %p110 = por %p108, %p109
      %p112 = scmp.ne.s32.totalorder %s97, %s111
      %p113 = scmp.eq.s32.totalorder %s24, 0
      %p114 = por %p112, %p113
      %s116 = sadd.s32 %s115, 1
      %p119 = scmp.eq.s32.totalorder %s18, 1
      %p120 = scmp.ne.s32.totalorder %s115, %s117
      %p121 = scmp.eq.s32.totalorder %s18, 0
      %p122 = por %p120, %p121
      %p123 = scmp.ne.s32.totalorder %s115, %s117
      %p124 = scmp.eq.s32.totalorder %s23, 1
      %p125 = por %p123, %p124
      %p126 = scmp.ne.s32.totalorder %s117, %s118
      %p127 = scmp.eq.s32.totalorder %s23, 0
      %p128 = por %p126, %p127
      %p129 = scmp.ne.s32.totalorder %s117, %s118
      %p130 = scmp.eq.s32.totalorder %s24, 1
      %p131 = por %p129, %p130
      %p133 = scmp.ne.s32.totalorder %s118, %s132
      %p134 = scmp.eq.s32.totalorder %s24, 0
      %p135 = por %p133, %p134
      %s137 = sadd.s32 %s136, 1
      %p140 = scmp.eq.s32.totalorder %s18, 1
      %p141 = scmp.ne.s32.totalorder %s136, %s138
      %p142 = scmp.eq.s32.totalorder %s18, 0
      %p143 = por %p141, %p142
      %p144 = scmp.ne.s32.totalorder %s136, %s138
      %p145 = scmp.eq.s32.totalorder %s23, 1
      %p146 = por %p144, %p145
      %p147 = scmp.ne.s32.totalorder %s138, %s139
      %p148 = scmp.eq.s32.totalorder %s23, 0
      %p149 = por %p147, %p148
      %p150 = scmp.ne.s32.totalorder %s138, %s139
      %p151 = scmp.eq.s32.totalorder %s24, 1
      %p152 = por %p150, %p151
      %p154 = scmp.ne.s32.totalorder %s139, %s153
      %p155 = scmp.eq.s32.totalorder %s24, 0
      %p156 = por %p154, %p155
      %s158 = sadd.s32 %s157, 1
      %p161 = scmp.eq.s32.totalorder %s18, 1
      %p162 = scmp.ne.s32.totalorder %s157, %s159
      %p163 = scmp.eq.s32.totalorder %s18, 0
      %p164 = por %p162, %p163
      %p165 = scmp.ne.s32.totalorder %s157, %s159
      %p166 = scmp.eq.s32.totalorder %s23, 1
      %p167 = por %p165, %p166
      %p168 = scmp.ne.s32.totalorder %s159, %s160
      %p169 = scmp.eq.s32.totalorder %s23, 0
      %p170 = por %p168, %p169
      %p171 = scmp.ne.s32.totalorder %s159, %s160
      %p172 = scmp.eq.s32.totalorder %s24, 1
      %p173 = por %p171, %p172
      %p175 = scmp.ne.s32.totalorder %s160, %s174
      %p176 = scmp.eq.s32.totalorder %s24, 0
      %p177 = por %p175, %p176
      %s179 = sadd.s32 %s178, 1
      %p182 = scmp.eq.s32.totalorder %s18, 1
      %p183 = scmp.ne.s32.totalorder %s178, %s180
      %p184 = scmp.eq.s32.totalorder %s18, 0
      %p185 = por %p183, %p184
      %p186 = scmp.ne.s32.totalorder %s178, %s180
      %p187 = scmp.eq.s32.totalorder %s23, 1
      %p188 = por %p186, %p187
      %p189 = scmp.ne.s32.totalorder %s180, %s181
      %p190 = scmp.eq.s32.totalorder %s23, 0
      %p191 = por %p189, %p190
      %p192 = scmp.ne.s32.totalorder %s180, %s181
      %p193 = scmp.eq.s32.totalorder %s24, 1
      %p194 = por %p192, %p193
      %p196 = scmp.ne.s32.totalorder %s181, %s195
      %p197 = scmp.eq.s32.totalorder %s24, 0
      %p198 = por %p196, %p197
      %s200 = sadd.s32 %s199, 1
      %p203 = scmp.eq.s32.totalorder %s18, 1
      %p204 = scmp.ne.s32.totalorder %s199, %s201
      %p205 = scmp.eq.s32.totalorder %s18, 0
      %p206 = por %p204, %p205
      %p207 = scmp.ne.s32.totalorder %s199, %s201
      %p208 = scmp.eq.s32.totalorder %s23, 1
      %p209 = por %p207, %p208
      %p210 = scmp.ne.s32.totalorder %s201, %s202
      %p211 = scmp.eq.s32.totalorder %s23, 0
      %p212 = por %p210, %p211
      %p213 = scmp.ne.s32.totalorder %s201, %s202
      %p214 = scmp.eq.s32.totalorder %s24, 1
      %p215 = por %p213, %p214
      %p217 = scmp.ne.s32.totalorder %s202, %s216
      %p218 = scmp.eq.s32.totalorder %s24, 0
      %p219 = por %p217, %p218
      %s220 = ssub.s32 %s18, %s25
      %p221 = scmp.eq.s32.totalorder %s220, 0
      %s223 = sadd.s32 %s222, 1
      %s224 = scalar_select %p221, %s222, %s223
      %p227 = pneg %p221
      %p228 = scmp.eq.s32.totalorder %s18, 1
      %p229 = por %p227, %p228
      %p230 = scmp.ne.s32.totalorder %s222, %s225
      %p231 = scmp.eq.s32.totalorder %s18, 0
      %p232 = por %p230, %p231
      %p233 = scmp.ne.s32.totalorder %s222, %s225
      %p234 = scmp.eq.s32.totalorder %s23, 1
      %p235 = por %p233, %p234
      %p236 = scmp.ne.s32.totalorder %s225, %s226
      %p237 = scmp.eq.s32.totalorder %s23, 0
      %p238 = por %p236, %p237
      %p239 = scmp.ne.s32.totalorder %s225, %s226
      %p240 = scmp.eq.s32.totalorder %s24, 1
      %p241 = por %p239, %p240
      %p243 = scmp.ne.s32.totalorder %s226, %s242
      %p244 = scmp.eq.s32.totalorder %s24, 0
      %p245 = por %p243, %p244
      %p246 = scmp.le.s32.totalorder 1, %s18
      %p247 = scmp.lt.s32.totalorder %s18, 3
      %p248 = pnand %p246, %p247
      %p249 = pneg %p248
      // Predicated region
      $region9: #{tpu_custom_call.1} parent=5 // pred_check
        _
      $region10: #{tpu_custom_call.1} parent=5 // pred_check_branch
        %251 = sbr.rel (%p248) target = $region12
      $region11: #{tpu_custom_call.1} parent=5 // pred_region
        %s252 = ssub.s32 %s18, 1
        // Predicated region
        $region13: #{tpu_custom_call.1} parent=11 // pred_check
          %p253 = pneg %p65
        $region14: #{tpu_custom_call.1} parent=11 // pred_check_branch
          %255 = sbr.rel (%p253) target = $region16
        $region15: #{tpu_custom_call.1} parent=11 // pred_region
          _
        $region16: #{tpu_custom_call.1} parent=11 // pred_fallthru
          _
        // Predicated region
        $region17: #{tpu_custom_call.1} parent=11 // pred_check
          %p256 = pneg %p86
        $region18: #{tpu_custom_call.1} parent=11 // pred_check_branch
          %258 = sbr.rel (%p256) target = $region20
        $region19: #{tpu_custom_call.1} parent=11 // pred_region
          _
        $region20: #{tpu_custom_call.1} parent=11 // pred_fallthru
          _
        // Predicated region
        $region21: #{tpu_custom_call.1} parent=11 // pred_check
          %p259 = pneg %p107
        $region22: #{tpu_custom_call.1} parent=11 // pred_check_branch
          %261 = sbr.rel (%p259) target = $region24
        $region23: #{tpu_custom_call.1} parent=11 // pred_region
          _
        $region24: #{tpu_custom_call.1} parent=11 // pred_fallthru
          _
        // Predicated region
        $region25: #{tpu_custom_call.1} parent=11 // pred_check
          %p262 = pneg %p128
        $region26: #{tpu_custom_call.1} parent=11 // pred_check_branch
          %264 = sbr.rel (%p262) target = $region28
        $region27: #{tpu_custom_call.1} parent=11 // pred_region
          _
        $region28: #{tpu_custom_call.1} parent=11 // pred_fallthru
          _
        // Predicated region
        $region29: #{tpu_custom_call.1} parent=11 // pred_check
          %p265 = pneg %p149
        $region30: #{tpu_custom_call.1} parent=11 // pred_check_branch
          %267 = sbr.rel (%p265) target = $region32
        $region31: #{tpu_custom_call.1} parent=11 // pred_region
          _
        $region32: #{tpu_custom_call.1} parent=11 // pred_fallthru
          _
        // Predicated region
        $region33: #{tpu_custom_call.1} parent=11 // pred_check
          %p268 = pneg %p170
        $region34: #{tpu_custom_call.1} parent=11 // pred_check_branch
          %270 = sbr.rel (%p268) target = $region36
        $region35: #{tpu_custom_call.1} parent=11 // pred_region
          _
        $region36: #{tpu_custom_call.1} parent=11 // pred_fallthru
          _
        // Predicated region
        $region37: #{tpu_custom_call.1} parent=11 // pred_check
          %p271 = pneg %p191
        $region38: #{tpu_custom_call.1} parent=11 // pred_check_branch
          %273 = sbr.rel (%p271) target = $region40
        $region39: #{tpu_custom_call.1} parent=11 // pred_region
          _
        $region40: #{tpu_custom_call.1} parent=11 // pred_fallthru
          _
        // Predicated region
        $region41: #{tpu_custom_call.1} parent=11 // pred_check
          %p274 = pneg %p212
        $region42: #{tpu_custom_call.1} parent=11 // pred_check_branch
          %276 = sbr.rel (%p274) target = $region44
        $region43: #{tpu_custom_call.1} parent=11 // pred_region
          _
        $region44: #{tpu_custom_call.1} parent=11 // pred_fallthru
          _
      $region12: #{tpu_custom_call.1} parent=5 // pred_fallthru
        _
      %p277 = scmp.lt.s32.totalorder %s18, 2
      // Predicated region
      $region45: #{tpu_custom_call.1} parent=5 // pred_check
        %p278 = pneg %p277
      $region46: #{tpu_custom_call.1} parent=5 // pred_check_branch
        %280 = sbr.rel (%p278) target = $region48
      $region47: #{tpu_custom_call.1} parent=5 // pred_region
        // Predicated region
        $region49: #{tpu_custom_call.1} parent=47 // pred_check
          %p281 = pneg %p38
        $region50: #{tpu_custom_call.1} parent=47 // pred_check_branch
          %283 = sbr.rel (%p281) target = $region52
        $region51: #{tpu_custom_call.1} parent=47 // pred_region
          %s284 = smul.u32 2, %s18
          %p285 = scmp.lt.s32.totalorder %s284, 3
          %s286 = scalar_select %p285, %s284, 3
          %s287 = smul.addr %s286, 4
          %s288 = scalar_lea.vmem %s0, %s287
          %s289 = smul.u32 2, %s18
        $region52: #{tpu_custom_call.1} parent=47 // pred_fallthru
          _
      $region48: #{tpu_custom_call.1} parent=5 // pred_fallthru
        _
      %p290 = scmp.le.s32.totalorder 1, %s18
      %p291 = scmp.lt.s32.totalorder %s18, 3
      %p292 = pnand %p290, %p291
      %p293 = pneg %p292
      // Predicated region
      $region53: #{tpu_custom_call.1} parent=5 // pred_check
        _
      $region54: #{tpu_custom_call.1} parent=5 // pred_check_branch
        %295 = sbr.rel (%p292) target = $region56
      $region55: #{tpu_custom_call.1} parent=5 // pred_region
        %s296 = ssub.s32 %s18, 1
        %s297 = smul.u32 2, %s23
        %p298 = scmp.lt.s32.totalorder %s297, 3
        %s299 = scalar_select %p298, %s297, 3
        %s300 = smul.addr %s299, 4
        %s301 = scalar_lea.vmem %s0, %s300
        %p302 = pneg %p44
        %p303 = pneg %p41
        %p304 = pneg %p65
        %p305 = pneg %p62
        %p306 = pneg %p86
        %p307 = pneg %p83
        %p308 = pneg %p107
        %p309 = pneg %p104
        %p310 = pneg %p128
        %p311 = pneg %p125
        %p312 = pneg %p149
        %p313 = pneg %p146
        %p314 = pneg %p170
        %p315 = pneg %p167
        %p316 = pneg %p191
        %p317 = pneg %p188
        %p318 = pneg %p212
        %p319 = pneg %p209
        %p320 = pneg %p238
        %p321 = pneg %p235
        %s322 = sand.u32 %s225, 1
        %s323 = scalar_lea.sflag [#allocation3], %s322
        %s324 = sand.u32 %s225, 1
        %s325 = smul.addr %s324, 64
        %s326 = scalar_lea.vmem [#allocation2], %s325
        %s327 = smul.u32 2, %s23
        %p328 = scmp.lt.s32.totalorder %s327, 3
        %s329 = scalar_select %p328, %s327, 3
        %s330 = smul.addr %s329, 4
        %s331 = scalar_lea.vmem %s0, %s330
        %s332 = smul.u32 2, %s23
        %s333 = smul.u32 2, %s23
        %v334 = vlaneseq
        %v335 = vand.u32 %v334, 127
        %v336 = vadd.s32 %v335, 128
        %vm337 = vcmp.lt.s32.totalorder %v335, 0
        %v338 = vsub.s32 0, %v335
        %v339 = vsel %vm337, %v338, %v335
        %v340 = vshrl.u32 %v339, 8
        %v341 = vand.u32 %v339, 255
        %v342 = vsub.s32 0, %v341
        %v343 = vsel %vm337, %v342, %v341
        %vm344 = vcmp.lt.s32.totalorder %v336, 0
        %v345 = vsub.s32 0, %v336
        %v346 = vsel %vm344, %v345, %v336
        %v347 = vshrl.u32 %v346, 8
        %v348 = vand.u32 %v346, 255
        %v349 = vsub.s32 0, %v348
        %v350 = vsel %vm344, %v349, %v348
        %vm351 = vcmp.ne.s32.totalorder %v343, 0
        %vm352 = vcmp.ne.s32.totalorder %v350, 0
        %vm353 = vcmp.lt.s32.totalorder %v343, 0
        %vm354 = vcmp.lt.s32.totalorder %v350, 0
        %vm355 = vmand %vm353, %vm351
        %vm356 = vmand %vm354, %vm352
        %v357 = vadd.s32 %v343, 256
        %v358 = vadd.s32 %v350, 256
        %v359 = vsel %vm355, %v357, %v343
        %v360 = vsel %vm356, %v358, %v350
        %vm361 = vcmp.lt.s32.totalorder %v335, 0
        %v362 = vsub.s32 0, %v335
        %v363 = vsel %vm361, %v362, %v335
        %v364 = vshrl.u32 %v363, 4
        %v365 = vand.u32 %v363, 15
        %v366 = vsub.s32 0, %v365
        %v367 = vsel %vm361, %v366, %v365
        %vm368 = vcmp.lt.s32.totalorder %v336, 0
        %v369 = vsub.s32 0, %v336
        %v370 = vsel %vm368, %v369, %v336
        %v371 = vshrl.u32 %v370, 4
        %v372 = vand.u32 %v370, 15
        %v373 = vsub.s32 0, %v372
        %v374 = vsel %vm368, %v373, %v372
        %vm375 = vcmp.ne.s32.totalorder %v367, 0
        %vm376 = vcmp.ne.s32.totalorder %v374, 0
        %vm377 = vcmp.lt.s32.totalorder %v367, 0
        %vm378 = vcmp.lt.s32.totalorder %v374, 0
        %vm379 = vmand %vm377, %vm375
        %vm380 = vmand %vm378, %vm376
        %v381 = vadd.s32 %v367, 16
        %v382 = vadd.s32 %v374, 16
        %v383 = vsel %vm379, %v381, %v367
        %v384 = vsel %vm380, %v382, %v374
        %vm385 = vcmp.ge.s32.totalorder %v359, 16
        %vm386 = vcmp.ge.s32.totalorder %v360, 16
        %v387 = vsel %vm385, 1, 0
        %v388 = vsel %vm386, 1, 0
        %v389 = vcvt.s32.f32 %v387
        %v390 = vcvt.s32.f32 %v388
        %vm391 = vcmp.lt.s32.totalorder %v359, 240
        %vm392 = vcmp.lt.s32.totalorder %v360, 240
        %v393 = vsel %vm391, 1, 0
        %v394 = vsel %vm392, 1, 0
        %v395 = vcvt.s32.f32 %v393
        %v396 = vcvt.s32.f32 %v394
        %vm397 = vcmp.ge.s32.totalorder %v383, 1
        %vm398 = vcmp.ge.s32.totalorder %v384, 1
        %v399 = vsel %vm397, 1, 0
        %v400 = vsel %vm398, 1, 0
        %v401 = vcvt.s32.f32 %v399
        %v402 = vcvt.s32.f32 %v400
        %vm403 = vcmp.le.s32.totalorder %v383, 14
        %vm404 = vcmp.le.s32.totalorder %v384, 14
        %v405 = vsel %vm403, 1, 0
        %v406 = vsel %vm404, 1, 0
        %v407 = vcvt.s32.f32 %v405
        %v408 = vcvt.s32.f32 %v406
        %v409 = vld [vmem:[%s331] sm:$0xff]
        %v410 = vld [vmem:[%s1] sm:$0xff]
        %v411 = vld [vmem:[%s2] sm:$0xff]
        %413 = vset.pattern.permute.xlu0 0
        %414 = vperm.xlu0 %413, %v411
        %v415 = vpop.permute.xlu0 %414
        %418 = vst [vmem:[#allocation1] ss:$2 sm:$0xff] %v409
        %v419 = vld.sshfl [vmem:[#allocation1] sm:$0xff pattern:$0x75316420]
        %v420 = vld.sshfl [vmem:[#allocation1 + $0x8] sm:$0xff pattern:$0x75316420]
        %vm421 = vcmask 31744
        %v423 = vsel %vm421, %v410, 0
        %vm425 = vcmask 1043456
        %v426 = vsel %vm425, %v419, 0
        %v428 = vsel %vm425, %v420, 0
        %430 = vmatpush.msra.mxu0 0.0
        %431 = vmatpush.msra.mxu0 0.0
        %432 = vmatpush.msra.mxu0 0.0
        %433 = vmatpush.msra.mxu0 0.0
        %434 = vmatpush.msra.mxu0 0.0
        %435 = vmatpush.msra.mxu0 0.0
        %436 = vmatpush.msra.mxu0 0.0
        %437 = vmatpush.msra.mxu0 0.0
        %438 = vmatpush.msra.mxu0 0.0
        %439 = vmatpush.msra.mxu0 0.0
        %440 = vmatpush.msra.mxu0 0.0
        %441 = vmatpush.msra.mxu0 0.0
        %442 = vmatpush.msra.mxu0 0.0
        %443 = vmatpush.msra.mxu0 0.0
        %444 = vmatpush.msra.mxu0 0.0
        %445 = vmatpush.msra.mxu0 %v426
        %446 = vmatmul.f32.gmra.mxu0 %v423
        %v447 = vpop.f32.mrf.mxu0
        %v448 = vadd.f32 %v415, %v447
        %449 = vdwg.mxu0
        %450 = vmatpush.msra.mxu0 0.0
        %451 = vmatpush.msra.mxu0 0.0
        %452 = vmatpush.msra.mxu0 0.0
        %453 = vmatpush.msra.mxu0 0.0
        %454 = vmatpush.msra.mxu0 0.0
        %455 = vmatpush.msra.mxu0 0.0
        %456 = vmatpush.msra.mxu0 0.0
        %457 = vmatpush.msra.mxu0 0.0
        %458 = vmatpush.msra.mxu0 0.0
        %459 = vmatpush.msra.mxu0 0.0
        %460 = vmatpush.msra.mxu0 0.0
        %461 = vmatpush.msra.mxu0 0.0
        %462 = vmatpush.msra.mxu0 0.0
        %463 = vmatpush.msra.mxu0 0.0
        %464 = vmatpush.msra.mxu0 0.0
        %465 = vmatpush.msra.mxu0 %v428
        %466 = vmatmul.f32.gmra.mxu0 %v423
        %v467 = vpop.f32.mrf.mxu0
        %v468 = vadd.f32 %v415, %v467
        %469 = vdwg.mxu0
        %v470 = vmax.f32 %v448, 0.0
        %v471 = vmax.f32 %v468, 0.0
        %472 = vrot.lane.b32.xlu0 %v470, 16
        %v473 = vpop.permute.xlu0 %472
        %474 = vrot.lane.b32.xlu0 %v471, 16
        %v475 = vpop.permute.xlu0 %474
        %vm476 = vcmp.lt.s32.totalorder %v335, 16
        %v477 = vsel %vm476, %v473, %v475
        %v478 = vsel %vm476, %v475, %v473
        %v479 = vmul.f32 %v478, %v389
        %v480 = vmul.f32 %v477, %v390
        %481 = vrot.lane.b32.xlu0 %v470, 112
        %v482 = vpop.permute.xlu0 %481
        %483 = vrot.lane.b32.xlu0 %v471, 112
        %v484 = vpop.permute.xlu0 %483
        %vm485 = vcmp.lt.s32.totalorder %v335, 112
        %v486 = vsel %vm485, %v482, %v484
        %v487 = vsel %vm485, %v484, %v482
        %v488 = vmul.f32 %v486, %v395
        %v489 = vmul.f32 %v487, %v396
        %v490 = vld [vmem:[%s3] sm:$0xff]
        %v491 = vld [vmem:[%s4] sm:$0xff]
        %493 = vset.pattern.permute.xlu0 0
        %494 = vperm.xlu0 %493, %v491
        %v495 = vpop.permute.xlu0 %494
        %vm497 = vcmask 195584
        %v499 = vsel %vm497, %v490, 0
        %501 = vmatpush.msra.mxu0 0.0
        %502 = vmatpush.msra.mxu0 0.0
        %503 = vmatpush.msra.mxu0 0.0
        %504 = vmatpush.msra.mxu0 0.0
        %505 = vmatpush.msra.mxu0 0.0
        %506 = vmatpush.msra.mxu0 0.0
        %507 = vmatpush.msra.mxu0 0.0
        %508 = vmatpush.msra.mxu0 0.0
        %509 = vmatpush.msra.mxu0 0.0
        %510 = vmatpush.msra.mxu0 0.0
        %511 = vmatpush.msra.mxu0 0.0
        %512 = vmatpush.msra.mxu0 0.0
        %513 = vmatpush.msra.mxu0 0.0
        %514 = vmatpush.msra.mxu0 %v488
        %515 = vmatpush.msra.mxu0 %v470
        %516 = vmatpush.msra.mxu0 %v479
        %517 = vmatmul.f32.gmra.mxu0 %v499
        %v518 = vpop.f32.mrf.mxu0
        %v519 = vadd.f32 %v495, %v518
        %520 = vdwg.mxu0
        %521 = vmatpush.msra.mxu0 0.0
        %522 = vmatpush.msra.mxu0 0.0
        %523 = vmatpush.msra.mxu0 0.0
        %524 = vmatpush.msra.mxu0 0.0
        %525 = vmatpush.msra.mxu0 0.0
        %526 = vmatpush.msra.mxu0 0.0
        %527 = vmatpush.msra.mxu0 0.0
        %528 = vmatpush.msra.mxu0 0.0
        %529 = vmatpush.msra.mxu0 0.0
        %530 = vmatpush.msra.mxu0 0.0
        %531 = vmatpush.msra.mxu0 0.0
        %532 = vmatpush.msra.mxu0 0.0
        %533 = vmatpush.msra.mxu0 0.0
        %534 = vmatpush.msra.mxu0 %v489
        %535 = vmatpush.msra.mxu0 %v471
        %536 = vmatpush.msra.mxu0 %v480
        %537 = vmatmul.f32.gmra.mxu0 %v499
        %v538 = vpop.f32.mrf.mxu0
        %v539 = vadd.f32 %v495, %v538
        %540 = vdwg.mxu0
        %v541 = vmax.f32 %v519, 0.0
        %v542 = vmax.f32 %v539, 0.0
        %543 = vrot.lane.b32.xlu0 %v541, 1
        %v544 = vpop.permute.xlu0 %543
        %545 = vrot.lane.b32.xlu0 %v542, 1
        %v546 = vpop.permute.xlu0 %545
        %vm547 = vcmp.lt.s32.totalorder %v335, 1
        %v548 = vsel %vm547, %v544, %v546
        %v549 = vsel %vm547, %v546, %v544
        %v550 = vmul.f32 %v549, %v401
        %v551 = vmul.f32 %v548, %v402
        %552 = vrot.lane.b32.xlu0 %v541, 127
        %v553 = vpop.permute.xlu0 %552
        %554 = vrot.lane.b32.xlu0 %v542, 127
        %v555 = vpop.permute.xlu0 %554
        %vm556 = vcmp.lt.s32.totalorder %v335, 127
        %v557 = vsel %vm556, %v553, %v555
        %v558 = vsel %vm556, %v555, %v553
        %v559 = vmul.f32 %v557, %v407
        %v560 = vmul.f32 %v558, %v408
        %v561 = vld [vmem:[%s5] sm:$0xff]
        %v562 = vld [vmem:[%s6] sm:$0xff]
        %564 = vset.pattern.permute.xlu0 0
        %565 = vperm.xlu0 %564, %v562
        %v566 = vpop.permute.xlu0 %565
        %v569 = vsel %vm497, %v561, 0
        %571 = vmatpush.msra.mxu0 0.0
        %572 = vmatpush.msra.mxu0 0.0
        %573 = vmatpush.msra.mxu0 0.0
        %574 = vmatpush.msra.mxu0 0.0
        %575 = vmatpush.msra.mxu0 0.0
        %576 = vmatpush.msra.mxu0 0.0
        %577 = vmatpush.msra.mxu0 0.0
        %578 = vmatpush.msra.mxu0 0.0
        %579 = vmatpush.msra.mxu0 0.0
        %580 = vmatpush.msra.mxu0 0.0
        %581 = vmatpush.msra.mxu0 0.0
        %582 = vmatpush.msra.mxu0 0.0
        %583 = vmatpush.msra.mxu0 0.0
        %584 = vmatpush.msra.mxu0 %v559
        %585 = vmatpush.msra.mxu0 %v541
        %586 = vmatpush.msra.mxu0 %v550
        %587 = vmatmul.f32.gmra.mxu0 %v569
        %v588 = vpop.f32.mrf.mxu0
        %v589 = vadd.f32 %v566, %v588
        %590 = vdwg.mxu0
        %591 = vmatpush.msra.mxu0 0.0
        %592 = vmatpush.msra.mxu0 0.0
        %593 = vmatpush.msra.mxu0 0.0
        %594 = vmatpush.msra.mxu0 0.0
        %595 = vmatpush.msra.mxu0 0.0
        %596 = vmatpush.msra.mxu0 0.0
        %597 = vmatpush.msra.mxu0 0.0
        %598 = vmatpush.msra.mxu0 0.0
        %599 = vmatpush.msra.mxu0 0.0
        %600 = vmatpush.msra.mxu0 0.0
        %601 = vmatpush.msra.mxu0 0.0
        %602 = vmatpush.msra.mxu0 0.0
        %603 = vmatpush.msra.mxu0 0.0
        %604 = vmatpush.msra.mxu0 %v560
        %605 = vmatpush.msra.mxu0 %v542
        %606 = vmatpush.msra.mxu0 %v551
        %607 = vmatmul.f32.gmra.mxu0 %v569
        %v608 = vpop.f32.mrf.mxu0
        %v609 = vadd.f32 %v566, %v608
        %610 = vdwg.mxu0
        %v611 = vmax.f32 %v589, 0.0
        %v612 = vmax.f32 %v609, 0.0
        %v613 = vld [vmem:[%s7] sm:$0xff]
        %v614 = vld [vmem:[%s7 + $0x8] sm:$0xff]
        %v615 = vld [vmem:[%s7 + $0x10] sm:$0xff]
        %v616 = vld [vmem:[%s7 + $0x18] sm:$0xff]
        %v617 = vld [vmem:[%s8] sm:$0xff]
        %v618 = vld [vmem:[%s8 + $0x8] sm:$0xff]
        %v619 = vld [vmem:[%s8 + $0x10] sm:$0xff]
        %v620 = vld [vmem:[%s8 + $0x18] sm:$0xff]
        %622 = vset.pattern.permute.xlu0 0
        %623 = vperm.xlu0 %622, %v617
        %v624 = vpop.permute.xlu0 %623
        %627 = vset.pattern.permute.xlu0 0
        %628 = vperm.xlu0 %627, %v618
        %v629 = vpop.permute.xlu0 %628
        %632 = vset.pattern.permute.xlu0 0
        %633 = vperm.xlu0 %632, %v619
        %v634 = vpop.permute.xlu0 %633
        %637 = vset.pattern.permute.xlu0 0
        %638 = vperm.xlu0 %637, %v620
        %v639 = vpop.permute.xlu0 %638
        %vm641 = vcmask 64512
        %v643 = vsel %vm641, %v613, 0
        %v646 = vsel %vm641, %v614, 0
        %v649 = vsel %vm641, %v615, 0
        %v652 = vsel %vm641, %v616, 0
        %654 = vmatpush.msra.mxu0 0.0
        %655 = vmatpush.msra.mxu0 0.0
        %656 = vmatpush.msra.mxu0 0.0
        %657 = vmatpush.msra.mxu0 0.0
        %658 = vmatpush.msra.mxu0 0.0
        %659 = vmatpush.msra.mxu0 0.0
        %660 = vmatpush.msra.mxu0 0.0
        %661 = vmatpush.msra.mxu0 0.0
        %662 = vmatpush.msra.mxu0 0.0
        %663 = vmatpush.msra.mxu0 0.0
        %664 = vmatpush.msra.mxu0 0.0
        %665 = vmatpush.msra.mxu0 0.0
        %666 = vmatpush.msra.mxu0 0.0
        %667 = vmatpush.msra.mxu0 0.0
        %668 = vmatpush.msra.mxu0 0.0
        %669 = vmatpush.msra.mxu0 %v611
        %670 = vmatmul.f32.gmra.mxu0 %v643
        %v671 = vpop.f32.mrf.mxu0
        %v672 = vadd.f32 %v624, %v671
        %673 = vmatmul.f32.gmra.mxu0 %v646
        %v674 = vpop.f32.mrf.mxu0
        %v675 = vadd.f32 %v629, %v674
        %676 = vmatmul.f32.gmra.mxu0 %v649
        %v677 = vpop.f32.mrf.mxu0
        %v678 = vadd.f32 %v634, %v677
        %679 = vmatmul.f32.gmra.mxu0 %v652
        %v680 = vpop.f32.mrf.mxu0
        %v681 = vadd.f32 %v639, %v680
        %682 = vdwg.mxu0
        %683 = vmatpush.msra.mxu0 0.0
        %684 = vmatpush.msra.mxu0 0.0
        %685 = vmatpush.msra.mxu0 0.0
        %686 = vmatpush.msra.mxu0 0.0
        %687 = vmatpush.msra.mxu0 0.0
        %688 = vmatpush.msra.mxu0 0.0
        %689 = vmatpush.msra.mxu0 0.0
        %690 = vmatpush.msra.mxu0 0.0
        %691 = vmatpush.msra.mxu0 0.0
        %692 = vmatpush.msra.mxu0 0.0
        %693 = vmatpush.msra.mxu0 0.0
        %694 = vmatpush.msra.mxu0 0.0
        %695 = vmatpush.msra.mxu0 0.0
        %696 = vmatpush.msra.mxu0 0.0
        %697 = vmatpush.msra.mxu0 0.0
        %698 = vmatpush.msra.mxu0 %v612
        %699 = vmatmul.f32.gmra.mxu0 %v643
        %v700 = vpop.f32.mrf.mxu0
        %v701 = vadd.f32 %v624, %v700
        %702 = vmatmul.f32.gmra.mxu0 %v646
        %v703 = vpop.f32.mrf.mxu0
        %v704 = vadd.f32 %v629, %v703
        %705 = vmatmul.f32.gmra.mxu0 %v649
        %v706 = vpop.f32.mrf.mxu0
        %v707 = vadd.f32 %v634, %v706
        %708 = vmatmul.f32.gmra.mxu0 %v652
        %v709 = vpop.f32.mrf.mxu0
        %v710 = vadd.f32 %v639, %v709
        %711 = vdwg.mxu0
        %712 = vst [vmem:[%s326] sm:$0xff] %v672
        %713 = vst [vmem:[%s326 + $0x8] sm:$0xff] %v701
        %714 = vst [vmem:[%s326 + $0x10] sm:$0xff] %v675
        %715 = vst [vmem:[%s326 + $0x18] sm:$0xff] %v704
        %716 = vst [vmem:[%s326 + $0x20] sm:$0xff] %v678
        %717 = vst [vmem:[%s326 + $0x28] sm:$0xff] %v707
        %718 = vst [vmem:[%s326 + $0x30] sm:$0xff] %v681
        %719 = vst [vmem:[%s326 + $0x38] sm:$0xff] %v710
        %s720 = sand.u32 %s225, 1
        %s721 = scalar_lea.sflag [#allocation3], %s720
        %s722 = sand.u32 %s225, 1
        %s723 = smul.addr %s722, 64
        %s724 = scalar_lea.vmem [#allocation2], %s723
        // Predicated region
        $region57: #{tpu_custom_call.1} parent=55 // pred_check
          %p725 = pneg %p235
        $region58: #{tpu_custom_call.1} parent=55 // pred_check_branch
          %727 = sbr.rel (%p725) target = $region60
        $region59: #{tpu_custom_call.1} parent=55 // pred_region
          %s728 = smul.u32 2, %s23
          %730 = vsyncadd %s721, 0
          %s731 = smul.addr %s728, 8
          %s732 = scalar_lea.hbm %s9, %s731
          %s733 = sshll.u32 %s724, 4
          %s734 = int_to_ptr.vmem [resolvable:$true] %s733
          %s735 = sshll.u32 %s732, 4
          %s736 = int_to_ptr.hbm [resolvable:$true] %s735
          %741 = dma.vmem_to_hbm [thread:$0]  %s734, 1024, %s736, %s721, 256, 512, 16
        $region60: #{tpu_custom_call.1} parent=55 // pred_fallthru
          _
      $region56: #{tpu_custom_call.1} parent=5 // pred_fallthru
        _
      %p742 = scmp.le.s32.totalorder 2, %s18
      // Predicated region
      $region61: #{tpu_custom_call.1} parent=5 // pred_check
        %p743 = pneg %p742
      $region62: #{tpu_custom_call.1} parent=5 // pred_check_branch
        %745 = sbr.rel (%p743) target = $region64
      $region63: #{tpu_custom_call.1} parent=5 // pred_region
        %s746 = ssub.s32 %s18, 2
        // Predicated region
        $region65: #{tpu_custom_call.1} parent=63 // pred_check
          %p747 = pneg %p241
        $region66: #{tpu_custom_call.1} parent=63 // pred_check_branch
          %749 = sbr.rel (%p747) target = $region68
        $region67: #{tpu_custom_call.1} parent=63 // pred_region
          %s750 = sand.u32 %s226, 1
          %s751 = scalar_lea.sflag [#allocation3], %s750
          %s752 = sand.u32 %s226, 1
          %s753 = smul.addr %s752, 64
          %s754 = scalar_lea.vmem [#allocation2], %s753
          %756 = dma.done %s751, 1024
        $region68: #{tpu_custom_call.1} parent=63 // pred_fallthru
          _
      $region64: #{tpu_custom_call.1} parent=5 // pred_fallthru
        _
    $region6: #{tpu_custom_call.1} parent=1 // loop_footer
      %s22 = sadd.s32 1, %s18
    $region7: #{tpu_custom_call.1} parent=1 // loop_footer_branch
      %17 = sbr.rel target = $region3
    $region8: #{tpu_custom_call.1} parent=1 // loop_exit
      _
    %757 = vsyncpa [#allocation3], 1
    %s758 = scalar_lea.sflag [#allocation3], 1
    %759 = vsyncpa %s758, 1

</llo_original>
